<compile_context>
chip_gen: v7x
topology: tpu7x:2x2x1
jax: 0.10.0
libtpu: 0.0.40
codegen_flags: <defaults>
</compile_context>

<pallas_src>
import jax
import jax.numpy as jnp
from jax.experimental import pallas as pl
from jax.experimental.pallas import tpu as pltpu

MAX_LEN = 16      # positional table length
D_MODEL = 32      # model width
DROPOUT_P = 0.1   # inference mode: identity
LANE = 128        # TPU vreg lane width


# ------------------------------- Pallas kernel -------------------------------

def _pos_broadcast_kernel(w_ref, out_ref):
    # w_ref:   (rows, 128)     lane-dense flattened embedding table (resident in VMEM)
    # out_ref: (B*rows, 128)   batch folded into the sublane axis — one dense store
    reps = out_ref.shape[0] // w_ref.shape[0]
    out_ref[...] = jnp.tile(w_ref[...], (reps, 1))


# --------------------------------- wrapper -----------------------------------

def positional_encoding(x, weight):
    """x: (B, S, D) — only its static batch size is used.  weight: (max_len, d_model)."""
    B = x.shape[0]
    max_len, d_model = weight.shape
    total = max_len * d_model

    # Lane-dense packing: flatten the table and (zero-)pad to a multiple of 128 lanes so
    # every load/store inside the kernel is a full-width, unmasked vreg access.
    padded_total = ((total + LANE - 1) // LANE) * LANE
    w_flat = weight.reshape(-1)
    if padded_total != total:
        w_flat = jnp.pad(w_flat, (0, padded_total - total))
    rows = padded_total // LANE
    w2d = w_flat.reshape(rows, LANE)

    out = pl.pallas_call(
        _pos_broadcast_kernel,
        out_shape=jax.ShapeDtypeStruct((B * rows, LANE), weight.dtype),
        in_specs=[pl.BlockSpec(memory_space=pltpu.MemorySpace.VMEM)],
        out_specs=pl.BlockSpec(memory_space=pltpu.MemorySpace.VMEM),
    )(w2d)

    # TODO(synk): train-mode dropout (independent Bernoulli mask per (b, position, channel)
    # drawn in-kernel over the (B*rows, 128) slab via pltpu.prng_seed + pltpu.prng_random_bits,
    # scaled by 1/(1-p)) is not modeled; inference semantics (dropout == identity) are used.
    out = out.reshape(B, rows * LANE)[:, :total]
    return out.reshape(B, max_len, d_model)


# ------------------------------------ main ------------------------------------

if __name__ == "__main__":
    key = jax.random.PRNGKey(0)
    kx, kw = jax.random.split(key)

    B, S = 2, 8
    x = jax.random.normal(kx, (B, S, D_MODEL), jnp.float32)
    # nn.Embedding default init: N(0, 1)
    weight = jax.random.normal(kw, (MAX_LEN, D_MODEL), jnp.float32)

    out = jax.block_until_ready(positional_encoding(x, weight))

    # pure-JAX reference: embedding.weight broadcast to (B, max_len, d_model), dropout = identity
    ref = jnp.broadcast_to(weight[None, :, :], (B, MAX_LEN, D_MODEL))

    assert out.shape == (B, MAX_LEN, D_MODEL)
    assert bool(jnp.all(jnp.isfinite(out)))
    assert bool(jnp.allclose(out, ref))
    print("KERNEL_OK")
</pallas_src>

<mosaic_0001>
module attributes {stable_mosaic.version = 11 : i64} {
  func.func @_pos_broadcast_kernel(%arg0: memref<4x128xf32, #tpu.memory_space<vmem>>, %arg1: memref<8x128xf32, #tpu.memory_space<vmem>>) attributes {dimension_semantics = [], scalar_prefetch = 0 : i64, scratch_operands = 0 : i64, tpu.core_type = #tpu.core_type<tc>} {
    %c0 = arith.constant 0 : index
    %c0_0 = arith.constant 0 : index
    %0 = vector.load %arg0[%c0, %c0_0] : memref<4x128xf32, #tpu.memory_space<vmem>>, vector<4x128xf32>
    %1 = tpu.concatenate %0, %0 in 0 : vector<4x128xf32>, vector<4x128xf32> -> vector<8x128xf32>
    %c0_1 = arith.constant 0 : index
    %c0_2 = arith.constant 0 : index
    %2 = vector.load %arg1[%c0_1, %c0_2] : memref<8x128xf32, #tpu.memory_space<vmem>>, vector<8x128xf32>
    tpu.vector_store %arg1[%c0_1, %c0_2], %1 {strides = array<i32>} : memref<8x128xf32, #tpu.memory_space<vmem>>, vector<8x128xf32>,
    return
  }
}

</mosaic_0001>

<llo_original>
// kernel: tpu_custom_call.1
$region0: #{tpu_custom_call.1}
  #allocation0 [shape = 'u32[]', space=smem, size = 0x4, offset = 0x4, fixed_abs, tag = 'smem constant byte address 0x4 - core index']
  #allocation1 [shape = 'u32[144,128]{1,0:T(1,128)}', space=vmem, size = 0x12000, scoped, tag = 'internal scratch']
  %s0 = inlined_call_operand.hbm [shape: f32[4,128], index: 0, kind: input, shape index: {}]
  %s1 = inlined_call_operand.hbm [shape: f32[8,128], index: 1, kind: output, shape index: {}]
  %s2 = sld [smem:[#allocation0]]
  $region18: #{tpu_custom_call.1} parent=0
    _
  %s4 = ssub.s32 1, %s2
  %s5 = scalar_select 0, %s4, %s2
  $region1: #{tpu_custom_call.1} parent=0
    #allocation2 [shape = 'u8[2048]{0}', space=vmem, size = 0x800, scoped, tag = 'input window, operand 0, single buffered']
    #allocation3 [shape = 's32[1]{0}', space=sflag, size = 0x4, scoped, tag = 'scoped memory for tpu_custom_call.1']
    #allocation4 [shape = 's32[1]{0}', space=sflag, size = 0x4, scoped, tag = 'scoped memory for tpu_custom_call.1']
    #allocation5 [shape = 'u8[4096]{0}', space=vmem, size = 0x1000, scoped, tag = 'output window, operand 0, single buffered']
    %6 = vsyncpa [#allocation3], 0
    %7 = vsyncpa [#allocation4], 0
    // Predicated region
    $region2: #{tpu_custom_call.1} parent=1 // pred_check
      _
    $region3: #{tpu_custom_call.1} parent=1 // pred_check_branch
      %9 = sbr.rel (0) target = $region5
    $region4: #{tpu_custom_call.1} parent=1 // pred_region
      %s11 = ssub.s32 64, 64
      %12 = vsyncadd [#allocation3], %s11
      %s14 = sshll.u32 [#allocation2], 4
      %s15 = int_to_ptr.vmem [resolvable:$true] %s14
      %17 = dma.hbm_to_vmem [thread:$0]  %s0, 64, %s15, [#allocation3]
    $region5: #{tpu_custom_call.1} parent=1 // pred_fallthru
      _
    // Predicated region
    $region6: #{tpu_custom_call.1} parent=1 // pred_check
      _
    $region7: #{tpu_custom_call.1} parent=1 // pred_check_branch
      %19 = sbr.rel (0) target = $region9
    $region8: #{tpu_custom_call.1} parent=1 // pred_region
      %20 = dma.done [#allocation3], 64
    $region9: #{tpu_custom_call.1} parent=1 // pred_fallthru
      _
    %v21 = vld [vmem:[#allocation2] sm:$0xf]
    %v23 = vrot.slane %v21, 4
    %vm25 = vcmask 1043456
    %v26 = vsel %vm25, %v21, %v23
    %27 = vst [vmem:[#allocation5] sm:$0xff] %v26
    // Predicated region
    $region10: #{tpu_custom_call.1} parent=1 // pred_check
      _
    $region11: #{tpu_custom_call.1} parent=1 // pred_check_branch
      %29 = sbr.rel (0) target = $region13
    $region12: #{tpu_custom_call.1} parent=1 // pred_region
      %s31 = ssub.s32 128, 128
      %32 = vsyncadd [#allocation4], %s31
      %s34 = sshll.u32 [#allocation5], 4
      %s35 = int_to_ptr.vmem [resolvable:$true] %s34
      %37 = dma.vmem_to_hbm [thread:$0]  %s35, 128, %s1, [#allocation4]
    $region13: #{tpu_custom_call.1} parent=1 // pred_fallthru
      _
    // Predicated region
    $region14: #{tpu_custom_call.1} parent=1 // pred_check
      _
    $region15: #{tpu_custom_call.1} parent=1 // pred_check_branch
      %39 = sbr.rel (0) target = $region17
    $region16: #{tpu_custom_call.1} parent=1 // pred_region
      %40 = dma.done [#allocation4], 128
    $region17: #{tpu_custom_call.1} parent=1 // pred_fallthru
      _
    %41 = vsyncpa [#allocation3], 1
    %42 = vsyncpa [#allocation4], 1

</llo_original>
